<compile_context>
chip_gen: v7x
topology: tpu7x:2x2x1
jax: 0.10.0
libtpu: 0.0.40
codegen_flags: <defaults>
</compile_context>

<pallas_src>
import math
import functools
import numpy as np

import jax
import jax.numpy as jnp
from jax.experimental import pallas as pl
from jax.experimental.pallas import tpu as pltpu

F32 = jnp.float32
BF16 = jnp.bfloat16
_NEG = -1e30
_EPS = 1e-5


# ----------------------------------------------------------------------------
# small helpers
# ----------------------------------------------------------------------------
def _round_up(x, m):
    return ((x + m - 1) // m) * m


def _pick_tile(n, target, align, fallback_align=None):
    """Largest tile <= target that divides n and is a multiple of `align`
    (optionally falling back to `fallback_align`, then to the full dim)."""
    if n <= target:
        return n
    aligns = [align] if fallback_align is None else [align, fallback_align]
    for a in aligns:
        t = (target // a) * a
        while t >= a:
            if n % t == 0:
                return t
            t -= a
    return n


@functools.lru_cache(maxsize=None)
def _vmem_limit():
    """Generation-aware VMEM limit: ~60% of physical capacity, capped."""
    cap = 64 * 1024 * 1024          # safe fallback (v7x physical)
    try:
        info = pltpu.get_tpu_info()
        cap = int(getattr(info, "vmem_capacity_bytes", cap))
    except Exception:
        pass
    return int(min(cap * 6 // 10, 100 * 1024 * 1024))


def _cparams(*dims):
    return pltpu.CompilerParams(dimension_semantics=dims,
                                vmem_limit_bytes=_vmem_limit())


# ----------------------------------------------------------------------------
# kernel bodies
# ----------------------------------------------------------------------------
def _rmsnorm_kernel(x_ref, a_ref, o_ref):
    x = x_ref[...].astype(F32)
    var = jnp.mean(x * x, axis=-1, keepdims=True)
    o_ref[...] = (x * jax.lax.rsqrt(var + _EPS) * a_ref[...]).astype(o_ref.dtype)


def _matmul_kernel(lhs_ref, w_ref, o_ref, acc_ref):
    @pl.when(pl.program_id(2) == 0)
    def _():
        acc_ref[...] = jnp.zeros_like(acc_ref)

    acc_ref[...] += jnp.dot(lhs_ref[...], w_ref[...],
                            preferred_element_type=F32)

    @pl.when(pl.program_id(2) == pl.num_programs(2) - 1)
    def _():
        o_ref[...] = acc_ref[...].astype(o_ref.dtype)


def _matmul_resid_norm_kernel(lhs_ref, w_ref, r_ref, a_ref,
                              x_ref, xn_ref, acc_ref):
    """x = resid + lhs @ w ; xn = rmsnorm(x) * a   (fused epilogue)."""
    @pl.when(pl.program_id(1) == 0)
    def _():
        acc_ref[...] = r_ref[...]

    acc_ref[...] += jnp.dot(lhs_ref[...], w_ref[...],
                            preferred_element_type=F32)

    @pl.when(pl.program_id(1) == pl.num_programs(1) - 1)
    def _():
        x = acc_ref[...]
        x_ref[...] = x
        var = jnp.mean(x * x, axis=-1, keepdims=True)
        xn_ref[...] = (x * jax.lax.rsqrt(var + _EPS)
                       * a_ref[...]).astype(xn_ref.dtype)


def _attention_kernel(q_ref, k_ref, v_ref, cos_ref, sin_ref, kmask_ref,
                      o_ref, qr_sc, m_sc, l_sc, acc_sc, *, scale, half, tkv):
    """Flash attention over the key axis for one (batch, head)."""
    kv = pl.program_id(2)
    S = qr_sc.shape[0]

    cos = cos_ref[...]                                # (S, Dh) rotate-half layout
    sin = sin_ref[...]                                # sign-folded sin

    @pl.when(kv == 0)
    def _():
        q = q_ref[0].astype(F32)                      # (S, Dh)
        qr_sc[...] = (q * cos + pltpu.roll(q, half, axis=1) * sin).astype(BF16)
        m_sc[...] = jnp.full_like(m_sc, -jnp.inf)
        l_sc[...] = jnp.zeros_like(l_sc)
        acc_sc[...] = jnp.zeros_like(acc_sc)

    off = pl.multiple_of(kv * tkv, 8)
    k = k_ref[0].astype(F32)                          # (tkv, Dh)
    v = v_ref[0]                                      # (tkv, Dh) bf16
    cos_k = cos_ref[pl.ds(off, tkv), :]
    sin_k = sin_ref[pl.ds(off, tkv), :]
    kr = (k * cos_k + pltpu.roll(k, half, axis=1) * sin_k).astype(BF16)

    s = jax.lax.dot_general(qr_sc[...], kr, (((1,), (1,)), ((), ())),
                            preferred_element_type=F32) * scale      # (S, tkv)

    # causal + key-padding mask generated in-kernel (no (S,S) HBM stream).
    q_pos = jax.lax.broadcasted_iota(jnp.int32, (S, tkv), 0)
    k_pos = jax.lax.broadcasted_iota(jnp.int32, (S, tkv), 1) + kv * tkv
    kval = kmask_ref[0, :, pl.ds(off, tkv)]                           # (1, tkv)
    keep = jnp.logical_and(q_pos >= k_pos, kval > 0.5)
    s = jnp.where(keep, s, _NEG)

    m_prev = m_sc[...]
    m_new = jnp.maximum(m_prev, jnp.max(s, axis=-1, keepdims=True))
    alpha = jnp.exp(m_prev - m_new)
    p = jnp.exp(s - m_new)
    l_sc[...] = alpha * l_sc[...] + jnp.sum(p, axis=-1, keepdims=True)
    acc_sc[...] = alpha * acc_sc[...] + jnp.dot(p.astype(BF16), v,
                                                preferred_element_type=F32)
    m_sc[...] = m_new

    @pl.when(kv == pl.num_programs(2) - 1)
    def _():
        o_ref[0] = (acc_sc[...] *
                    pl.reciprocal(l_sc[...], approx=True)).astype(o_ref.dtype)


def _swiglu_kernel(g_ref, u_ref, o_ref):
    g = g_ref[...].astype(F32)
    u = u_ref[...].astype(F32)
    o_ref[...] = (g * jax.nn.sigmoid(g) * u).astype(o_ref.dtype)


# ----------------------------------------------------------------------------
# pallas_call wrappers
# ----------------------------------------------------------------------------
def rmsnorm(x, alpha, out_dtype=BF16, tm_t=256):
    M, D = x.shape
    tm = _pick_tile(M, tm_t, 16, 8)
    return pl.pallas_call(
        _rmsnorm_kernel,
        out_shape=jax.ShapeDtypeStruct((M, D), out_dtype),
        grid=(M // tm,),
        in_specs=[pl.BlockSpec((tm, D), lambda i: (i, 0)),
                  pl.BlockSpec((1, D), lambda i: (0, 0))],
        out_specs=pl.BlockSpec((tm, D), lambda i: (i, 0)),
        compiler_params=_cparams("parallel"),
    )(x, alpha)


def matmul(lhs, w, out_dtype=BF16, tm_t=256, tn_t=1024, tk_t=1024):
    """out = lhs @ w with lhs (M,K) bf16, w (K,N) bf16, f32 accumulation."""
    M, K = lhs.shape
    Kw, N = w.shape
    assert K == Kw
    tm = _pick_tile(M, tm_t, 16, 8)
    tn = _pick_tile(N, tn_t, 128)
    tk = _pick_tile(K, tk_t, 128)
    return pl.pallas_call(
        _matmul_kernel,
        out_shape=jax.ShapeDtypeStruct((M, N), out_dtype),
        grid=(M // tm, N // tn, K // tk),
        in_specs=[pl.BlockSpec((tm, tk), lambda i, j, k: (i, k)),
                  pl.BlockSpec((tk, tn), lambda i, j, k: (k, j))],
        out_specs=pl.BlockSpec((tm, tn), lambda i, j, k: (i, j)),
        scratch_shapes=[pltpu.VMEM((tm, tn), F32)],
        compiler_params=_cparams("parallel", "parallel", "arbitrary"),
    )(lhs, w)


def matmul_resid_norm(lhs, w, resid, alpha, tm_t=128, tk_t=512):
    """x = resid + lhs @ w (f32), xn = rmsnorm(x) * alpha (bf16), fused."""
    M, K = lhs.shape
    Kw, D = w.shape
    assert K == Kw
    tm = _pick_tile(M, tm_t, 16, 8)
    tk = _pick_tile(K, tk_t, 128)
    return pl.pallas_call(
        _matmul_resid_norm_kernel,
        out_shape=(jax.ShapeDtypeStruct((M, D), F32),
                   jax.ShapeDtypeStruct((M, D), BF16)),
        grid=(M // tm, K // tk),
        in_specs=[pl.BlockSpec((tm, tk), lambda i, k: (i, k)),
                  pl.BlockSpec((tk, D), lambda i, k: (k, 0)),
                  pl.BlockSpec((tm, D), lambda i, k: (i, 0)),
                  pl.BlockSpec((1, D), lambda i, k: (0, 0))],
        out_specs=(pl.BlockSpec((tm, D), lambda i, k: (i, 0)),
                   pl.BlockSpec((tm, D), lambda i, k: (i, 0))),
        scratch_shapes=[pltpu.VMEM((tm, D), F32)],
        compiler_params=_cparams("parallel", "arbitrary"),
    )(lhs, w, resid, alpha)


def attention(qkv, cos_t, sin_t, key_mask, *, num_heads):
    """Flash attention. qkv: (B, S, 3*D) bf16 -> ctx (B, S, D) bf16."""
    B, S, threeD = qkv.shape
    D = threeD // 3
    H = num_heads
    Dh = D // H
    tkv = _pick_tile(S, 512, 128, 8)
    kern = functools.partial(_attention_kernel, scale=1.0 / math.sqrt(Dh),
                             half=Dh // 2, tkv=tkv)
    return pl.pallas_call(
        kern,
        out_shape=jax.ShapeDtypeStruct((B, S, D), BF16),
        grid=(B, H, S // tkv),
        in_specs=[
            pl.BlockSpec((1, S, Dh), lambda b, h, kv: (b, 0, h)),
            pl.BlockSpec((1, tkv, Dh), lambda b, h, kv: (b, kv, H + h)),
            pl.BlockSpec((1, tkv, Dh), lambda b, h, kv: (b, kv, 2 * H + h)),
            pl.BlockSpec((S, Dh), lambda b, h, kv: (0, 0)),
            pl.BlockSpec((S, Dh), lambda b, h, kv: (0, 0)),
            pl.BlockSpec((1, 1, S), lambda b, h, kv: (b, 0, 0)),
        ],
        out_specs=pl.BlockSpec((1, S, Dh), lambda b, h, kv: (b, 0, h)),
        scratch_shapes=[
            pltpu.VMEM((S, Dh), BF16),   # rotated q
            pltpu.VMEM((S, 1), F32),     # running max
            pltpu.VMEM((S, 1), F32),     # running denominator
            pltpu.VMEM((S, Dh), F32),    # output accumulator
        ],
        compiler_params=_cparams("parallel", "parallel", "arbitrary"),
    )(qkv, qkv, qkv, cos_t, sin_t, key_mask)


def swiglu(u, hffp, tm_t=256, th_t=1024):
    """u: (M, 2*hffp) bf16 = [gate | up] -> silu(gate)*up, no XLA slicing."""
    M = u.shape[0]
    tm = _pick_tile(M, tm_t, 16, 8)
    th = _pick_tile(hffp, th_t, 128)
    nj = hffp // th
    return pl.pallas_call(
        _swiglu_kernel,
        out_shape=jax.ShapeDtypeStruct((M, hffp), BF16),
        grid=(M // tm, nj),
        in_specs=[pl.BlockSpec((tm, th), lambda i, j: (i, j)),
                  pl.BlockSpec((tm, th), lambda i, j: (i, j + nj))],
        out_specs=pl.BlockSpec((tm, th), lambda i, j: (i, j)),
        compiler_params=_cparams("parallel", "parallel"),
    )(u, u)


# ----------------------------------------------------------------------------
# parameters
# ----------------------------------------------------------------------------
def init_params(key, *, dim, num_heads, num_layers, hidden_scale, card):
    assert dim % num_heads == 0
    dff = int(hidden_scale * dim)
    hff = (2 * dff) // 3       # TODO(synk): SwiGLU hidden sizing rule assumed
    ks = jax.random.split(key, 6)

    def w(k, shape, scale=0.02):
        return (scale * jax.random.normal(k, shape)).astype(F32)

    return {
        "text_emb":    w(ks[0], (card, dim)),
        "text_linear": w(ks[1], (card, dim)),
        "out_norm_w":  jnp.ones((1, dim), F32),
        "attn_norm_w": jnp.ones((num_layers, 1, dim), F32),
        "ffn_norm_w":  jnp.ones((num_layers, 1, dim), F32),
        "in_proj_w":   w(ks[2], (num_layers, 3 * dim, dim)),
        "out_proj_w":  w(ks[3], (num_layers, dim, dim)),
        "lin_in_w":    w(ks[4], (num_layers, 2 * hff, dim)),
        "lin_out_w":   w(ks[5], (num_layers, dim, hff)),
    }


def prepare_params(params, num_heads):
    """Host-side prep: permute Q/K rows to rotate-half channel order, transpose
    every weight to (in, out), zero-pad FFN hidden / vocab to multiples of 128,
    cast to bf16."""
    card, D = params["text_linear"].shape
    Dh = D // num_heads
    L = params["in_proj_w"].shape[0]
    Hff = params["lin_out_w"].shape[-1]
    Hffp = _round_up(Hff, 128)
    card_p = _round_up(card, 128)

    head_perm = np.concatenate([np.arange(0, Dh, 2), np.arange(1, Dh, 2)])
    qk_perm = (np.arange(num_heads)[:, None] * Dh + head_perm[None, :]).reshape(-1)
    row_perm = jnp.asarray(
        np.concatenate([qk_perm, D + qk_perm, 2 * D + np.arange(D)]), jnp.int32)

    def pad_cols(w2, n):
        m = w2.shape[1]
        return w2 if m == n else jnp.pad(w2, ((0, 0), (0, n - m)))

    wqkv_t, wo_t, win_t, wout_t = [], [], [], []
    for l in range(L):
        wqkv_t.append(jnp.take(params["in_proj_w"][l], row_perm, axis=0).T
                      .astype(BF16))
        wo_t.append(params["out_proj_w"][l].T.astype(BF16))
        w_in = params["lin_in_w"][l].T                    # (D, 2*Hff): [gate|up]
        gate = pad_cols(w_in[:, :Hff], Hffp)
        up = pad_cols(w_in[:, Hff:], Hffp)
        win_t.append(jnp.concatenate([gate, up], axis=1).astype(BF16))
        w_out = params["lin_out_w"][l].T                  # (Hff, D)
        if Hffp != Hff:
            w_out = jnp.pad(w_out, ((0, Hffp - Hff), (0, 0)))
        wout_t.append(w_out.astype(BF16))

    tl = params["text_linear"].T                          # (D, card)
    if card_p != card:
        tl = jnp.pad(tl, ((0, 0), (0, card_p - card)))

    return {
        "text_emb": params["text_emb"],
        "text_linear_t": tl.astype(BF16),
        "out_norm_w": params["out_norm_w"],
        "attn_norm_w": params["attn_norm_w"],
        "ffn_norm_w": params["ffn_norm_w"],
        "wqkv_t": wqkv_t, "wo_t": wo_t, "win_t": win_t, "wout_t": wout_t,
        "hff": Hff, "hffp": Hffp, "card": card,
    }


# ----------------------------------------------------------------------------
# forward pass
# ----------------------------------------------------------------------------
def helium_forward(prep, input_ids, attention_mask=None, *,
                   num_heads, max_period=10000.0, zero_token_id=-1):
    B, S = input_ids.shape
    D = prep["text_emb"].shape[1]
    card = prep["card"]
    H = num_heads
    Dh = D // H
    half = Dh // 2
    Hffp = prep["hffp"]
    L = len(prep["wqkv_t"])
    BS = B * S

    # TODO(synk): head dims not a multiple of 128 need a different attn layout.
    assert Dh % 128 == 0, "attention kernel requires head_dim % 128 == 0"

    # ClampedEmbedding (gather done in XLA; no cheap Pallas equivalent).
    is_zero = input_ids == zero_token_id
    ids = jnp.clip(input_ids, 0, None)
    x = jnp.take(prep["text_emb"], ids, axis=0)
    x = jnp.where(is_zero[..., None], 0.0, x).reshape(BS, D).astype(F32)

    if attention_mask is None:
        attention_mask = jnp.ones((B, S), F32)
    key_mask = attention_mask.astype(F32).reshape(B, 1, S)

    # RoPE tables (rotate-half layout; Q/K channels were permuted to match).
    freqs = jnp.exp(jnp.arange(half, dtype=F32) * (-math.log(max_period) * 2.0 / Dh))
    ang = jnp.arange(S, dtype=F32)[:, None] * freqs[None, :]          # (S, half)
    cos_t = jnp.concatenate([jnp.cos(ang), jnp.cos(ang)], axis=-1)    # (S, Dh)
    sin_t = jnp.concatenate([-jnp.sin(ang), jnp.sin(ang)], axis=-1)   # sign-folded

    # First norm (subsequent norms are fused into the residual matmuls).
    xn = rmsnorm(x, prep["attn_norm_w"][0])                           # (BS, D) bf16

    for l in range(L):
        # ---------------- self attention ---------------------------------
        qkv = matmul(xn, prep["wqkv_t"][l], out_dtype=BF16)           # (BS, 3D)
        ctx = attention(qkv.reshape(B, S, 3 * D), cos_t, sin_t, key_mask,
                        num_heads=H)                                  # (B, S, D)
        x, xn2 = matmul_resid_norm(ctx.reshape(BS, D), prep["wo_t"][l],
                                   x, prep["ffn_norm_w"][l])

        # ---------------- gated FFN (SwiGLU) ------------------------------
        u = matmul(xn2, prep["win_t"][l], out_dtype=BF16)             # (BS, 2*Hffp)
        h = swiglu(u, Hffp)                                           # (BS, Hffp)
        alpha_next = prep["attn_norm_w"][l + 1] if l + 1 < L else prep["out_norm_w"]
        x, xn = matmul_resid_norm(h, prep["wout_t"][l], x, alpha_next)

    # Vocab head: plain tiled matmul on the already-normalized activation.
    logits = matmul(xn, prep["text_linear_t"], out_dtype=F32)         # (BS, card_p)
    if logits.shape[1] != card:
        logits = logits[:, :card]
    gate_weight = 0.0   # TODO(synk): auxiliary gate weight not defined in module
    return logits.reshape(B, S, card), gate_weight


# ----------------------------------------------------------------------------
# pure-JAX reference (mirrors the kernel's bf16 rounding points)
# ----------------------------------------------------------------------------
def _ref_forward(params, input_ids, num_heads, max_period=10000.0, zero_token_id=-1):
    emb = params["text_emb"]
    B, S = input_ids.shape
    D = emb.shape[1]
    H = num_heads
    Dh = D // H
    Hff = params["lin_out_w"].shape[-1]
    half = Dh // 2

    b16 = lambda t: t.astype(BF16).astype(F32)

    is_zero = input_ids == zero_token_id
    ids = jnp.clip(input_ids, 0, None)
    x = jnp.where(is_zero[..., None], 0.0, jnp.take(emb, ids, axis=0)).astype(F32)

    freqs = jnp.exp(jnp.arange(half, dtype=F32) * (-math.log(max_period) * 2.0 / Dh))
    ang = jnp.arange(S, dtype=F32)[:, None] * freqs[None, :]
    cos, sin = jnp.cos(ang), jnp.sin(ang)
    causal = jnp.tril(jnp.ones((S, S), bool))

    def rms(v, a):
        return v * jax.lax.rsqrt(jnp.mean(v * v, -1, keepdims=True) + _EPS) * a

    def rope(t):   # interleaved-pair convention (as in the torch port)
        tr = t.reshape(B, H, S, half, 2)
        re, im = tr[..., 0], tr[..., 1]
        c, s = cos[None, None], sin[None, None]
        return jnp.stack([re * c - im * s, re * s + im * c], -1).reshape(B, H, S, Dh)

    L = params["attn_norm_w"].shape[0]
    for l in range(L):
        xn = b16(rms(x, params["attn_norm_w"][l, 0]))
        qkv = b16(xn @ b16(params["in_proj_w"][l].T))
        q, k, v = jnp.split(qkv, 3, axis=-1)
        heads = lambda t: t.reshape(B, S, H, Dh).transpose(0, 2, 1, 3)
        q, k, v = heads(q), heads(k), heads(v)
        q, k = b16(rope(q)), b16(rope(k))
        sc = jnp.einsum("bhsd,bhtd->bhst", q, k) / math.sqrt(Dh)
        sc = jnp.where(causal[None, None], sc, _NEG)
        p = b16(jax.nn.softmax(sc, axis=-1))
        ctx = b16(jnp.einsum("bhst,bhtd->bhsd", p, v)
                  .transpose(0, 2, 1, 3).reshape(B, S, D))
        x = x + ctx @ b16(params["out_proj_w"][l].T)
        xn2 = b16(rms(x, params["ffn_norm_w"][l, 0]))
        u = b16(xn2 @ b16(params["lin_in_w"][l].T))
        gate, up = u[..., :Hff], u[..., Hff:]
        h = b16(jax.nn.silu(gate) * up)
        x = x + h @ b16(params["lin_out_w"][l].T)
    xo = b16(rms(x, params["out_norm_w"][0]))
    return xo @ b16(params["text_linear"].T)


# ----------------------------------------------------------------------------
if __name__ == "__main__":
    dim, num_heads, num_layers, card = 256, 2, 2, 512
    B, S = 2, 8

    key = jax.random.PRNGKey(0)
    pkey, ikey = jax.random.split(key)
    params = init_params(pkey, dim=dim, num_heads=num_heads,
                         num_layers=num_layers, hidden_scale=4.125, card=card)
    input_ids = jax.random.randint(ikey, (B, S), 0, card, dtype=jnp.int32)

    prep = prepare_params(params, num_heads)
    logits, gate_weight = helium_forward(prep, input_ids, num_heads=num_heads)
    logits = jax.block_until_ready(logits)

    assert logits.shape == (B, S, card)
    assert bool(jnp.all(jnp.isfinite(logits)))

    ref = _ref_forward(params, input_ids, num_heads)
    np.testing.assert_allclose(np.asarray(logits), np.asarray(ref),
                               rtol=2e-2, atol=2e-2)
    print("KERNEL_OK")
</pallas_src>

<mosaic_0001>
module attributes {stable_mosaic.version = 11 : i64} {
  func.func @_rmsnorm_kernel(%arg0: i32, %arg1: memref<16x256xf32, #tpu.memory_space<vmem>>, %arg2: memref<1x256xf32, #tpu.memory_space<vmem>>, %arg3: memref<16x256xbf16, #tpu.memory_space<vmem>>) attributes {dimension_semantics = [#tpu.dimension_semantics<parallel>], iteration_bounds = array<i64: 1>, scalar_prefetch = 0 : i64, scratch_operands = 0 : i64, tpu.core_type = #tpu.core_type<tc>, window_params = [{transform_indices = @transform_0, window_bounds = array<i64: 16, 256>}, {pipeline_mode = #tpu.pipeline_mode<synchronous>, transform_indices = @transform_1, window_bounds = array<i64: 1, 256>}, {transform_indices = @transform_2, window_bounds = array<i64: 16, 256>}]} {
    %c0 = arith.constant 0 : index
    %c0_0 = arith.constant 0 : index
    %0 = vector.load %arg1[%c0, %c0_0] : memref<16x256xf32, #tpu.memory_space<vmem>>, vector<16x256xf32>
    %1 = arith.mulf %0, %0 : vector<16x256xf32>
    %cst = arith.constant dense<0.000000e+00> : vector<16xf32>
    %2 = vector.multi_reduction <add>, %1, %cst [1] : vector<16x256xf32> to vector<16xf32>
    %3 = vector.shape_cast %2 : vector<16xf32> to vector<16x1xf32>
    %cst_1 = arith.constant 2.560000e+02 : f32
    %4 = vector.broadcast %cst_1 : f32 to vector<16x1xf32>
    %5 = arith.divf %3, %4 : vector<16x1xf32>
    %cst_2 = arith.constant 9.99999974E-6 : f32
    %6 = vector.broadcast %cst_2 : f32 to vector<16x1xf32>
    %7 = arith.addf %5, %6 : vector<16x1xf32>
    %8 = math.rsqrt %7 : vector<16x1xf32>
    %9 = vector.broadcast %8 : vector<16x1xf32> to vector<16x256xf32>
    %10 = arith.mulf %0, %9 : vector<16x256xf32>
    %c0_3 = arith.constant 0 : index
    %c0_4 = arith.constant 0 : index
    %11 = vector.load %arg2[%c0_3, %c0_4] : memref<1x256xf32, #tpu.memory_space<vmem>>, vector<1x256xf32>
    %12 = vector.broadcast %11 : vector<1x256xf32> to vector<16x256xf32>
    %13 = arith.mulf %10, %12 : vector<16x256xf32>
    %14 = arith.truncf %13 : vector<16x256xf32> to vector<16x256xbf16>
    %c0_5 = arith.constant 0 : index
    %c0_6 = arith.constant 0 : index
    %15 = vector.load %arg3[%c0_5, %c0_6] : memref<16x256xbf16, #tpu.memory_space<vmem>>, vector<16x256xbf16>
    tpu.vector_store %arg3[%c0_5, %c0_6], %14 {strides = array<i32>} : memref<16x256xbf16, #tpu.memory_space<vmem>>, vector<16x256xbf16>,
    return
  }
  func.func @transform_0(%arg0: i32) -> (i32, i32) {
    %c0_i32 = arith.constant 0 : i32
    %c0_i32_0 = arith.constant 0 : i32
    return %arg0, %c0_i32 : i32, i32
  }
  func.func @transform_1(%arg0: i32) -> (i32, i32) {
    %c0_i32 = arith.constant 0 : i32
    %c0_i32_0 = arith.constant 0 : i32
    %c0_i32_1 = arith.constant 0 : i32
    return %c0_i32, %c0_i32_0 : i32, i32
  }
  func.func @transform_2(%arg0: i32) -> (i32, i32) {
    %c0_i32 = arith.constant 0 : i32
    %c0_i32_0 = arith.constant 0 : i32
    return %arg0, %c0_i32 : i32, i32
  }
}

</mosaic_0001>

<llo_original>
// kernel: tpu_custom_call.1
$region0: #{tpu_custom_call.1}
  #allocation0 [shape = 'u32[]', space=smem, size = 0x4, offset = 0x4, fixed_abs, tag = 'smem constant byte address 0x4 - core index']
  #allocation1 [shape = 'u32[144,128]{1,0:T(1,128)}', space=vmem, size = 0x12000, scoped, tag = 'internal scratch']
  %s0 = inlined_call_operand.hbm [shape: f32[16,256], index: 0, kind: input, shape index: {}]
  %s1 = inlined_call_operand.vmem [shape: f32[1,256], index: 1, kind: input, shape index: {}]
  %s2 = inlined_call_operand.hbm [shape: bf16[16,256], index: 2, kind: output, shape index: {}]
  %s3 = sld [smem:[#allocation0]]
  $region22: #{tpu_custom_call.1} parent=0
    _
  %s5 = ssub.s32 1, %s3
  %s6 = scalar_select 0, %s5, %s3
  $region1: #{tpu_custom_call.1} parent=0
    #allocation2 [shape = 'u8[16384]{0}', space=vmem, size = 0x4000, scoped, tag = 'input window, operand 0, single buffered']
    #allocation3 [shape = 's32[1]{0}', space=sflag, size = 0x4, scoped, tag = 'scoped memory for tpu_custom_call.1']
    #allocation4 [shape = 's32[1]{0}', space=sflag, size = 0x4, scoped, tag = 'scoped memory for tpu_custom_call.1']
    #allocation5 [shape = 'u8[8192]{0}', space=vmem, size = 0x2000, scoped, tag = 'output window, operand 0, single buffered']
    %7 = vsyncpa [#allocation3], 0
    %8 = vsyncpa [#allocation4], 0
    // Predicated region
    $region2: #{tpu_custom_call.1} parent=1 // pred_check
      _
    $region3: #{tpu_custom_call.1} parent=1 // pred_check_branch
      %10 = sbr.rel (0) target = $region5
    $region4: #{tpu_custom_call.1} parent=1 // pred_region
      %s12 = ssub.s32 512, 512
      %13 = vsyncadd [#allocation3], %s12
      %s14 = sshll.u32 [#allocation2], 4
      %s15 = int_to_ptr.vmem [resolvable:$true] %s14
      %20 = dma.hbm_to_vmem [thread:$0]  %s0, 512, %s15, [#allocation3], 256, 256, 16
    $region5: #{tpu_custom_call.1} parent=1 // pred_fallthru
      _
    // Predicated region
    $region6: #{tpu_custom_call.1} parent=1 // pred_check
      _
    $region7: #{tpu_custom_call.1} parent=1 // pred_check_branch
      %22 = sbr.rel (0) target = $region9
    $region8: #{tpu_custom_call.1} parent=1 // pred_region
      _
    $region9: #{tpu_custom_call.1} parent=1 // pred_fallthru
      _
    // Predicated region
    $region10: #{tpu_custom_call.1} parent=1 // pred_check
      _
    $region11: #{tpu_custom_call.1} parent=1 // pred_check_branch
      %24 = sbr.rel (0) target = $region13
    $region12: #{tpu_custom_call.1} parent=1 // pred_region
      %25 = dma.done [#allocation3], 512
    $region13: #{tpu_custom_call.1} parent=1 // pred_fallthru
      _
    %v26 = vld [vmem:[#allocation2] sm:$0xff]
    %v27 = vld [vmem:[#allocation2 + $0x8] sm:$0xff]
    %v28 = vld [vmem:[#allocation2 + $0x10] sm:$0xff]
    %v29 = vld [vmem:[#allocation2 + $0x18] sm:$0xff]
    %v30 = vmul.f32 %v26, %v26
    %v31 = vmul.f32 %v27, %v27
    %v32 = vmul.f32 %v28, %v28
    %v33 = vmul.f32 %v29, %v29
    %v34 = vadd.f32 %v30, %v31
    %35 = vadd.xlane.f32.xlu0 %v34
    %v36 = vpop.xlane.xlu0 %35
    %v37 = vadd.f32 %v32, %v33
    %38 = vadd.xlane.f32.xlu0 %v37
    %v39 = vpop.xlane.xlu0 %38
    %v40 = vrcp.pop 256.0
    %v41 = vmul.f32 %v36, %v40
    %v42 = vmul.f32 %v39, %v40
    %v43 = vadd.f32 %v41, 1e-05
    %v44 = vadd.f32 %v42, 1e-05
    %v45 = vrsqrt.pop %v43
    %v46 = vrsqrt.pop %v44
    %v47 = vmul.f32 %v26, %v45
    %v48 = vmul.f32 %v27, %v45
    %v49 = vmul.f32 %v28, %v46
    %v50 = vmul.f32 %v29, %v46
    %v51 = vld [vmem:[%s1] sm:$0x3]
    %v53 = vlaneseq
    %v54 = vshrl.u32 %v53, 7
    %v55 = vsub.s32 0, %v54
    %v56 = vrot.slane %v51, %v55
    %v57 = vlaneseq
    %v58 = vshrl.u32 %v57, 7
    %v59 = vsub.s32 1, %v58
    %v60 = vrot.slane %v51, %v59
    %v63 = vmul.f32 %v47, %v56
    %v64 = vmul.f32 %v48, %v60
    %v65 = vmul.f32 %v49, %v56
    %v66 = vmul.f32 %v50, %v60
    %v67 = vpack.c.bf16 %v65, %v63
    %v68 = vpack.c.bf16 %v66, %v64
    %v71 = vunpack.c.l.b16 %v67
    %v72 = vunpack.c.l.b16 %v68
    %v73 = vunpack.c.h.b16 %v67
    %v74 = vunpack.c.h.b16 %v68
    %v75 = vpack.c.b16 %v72, %v71
    %v76 = vpack.c.b16 %v74, %v73
    %79 = vst [vmem:[#allocation5] sm:$0xff] %v75
    %80 = vst [vmem:[#allocation5 + $0x8] sm:$0xff] %v76
    // Predicated region
    $region14: #{tpu_custom_call.1} parent=1 // pred_check
      _
    $region15: #{tpu_custom_call.1} parent=1 // pred_check_branch
      %82 = sbr.rel (0) target = $region17
    $region16: #{tpu_custom_call.1} parent=1 // pred_region
      %s84 = ssub.s32 256, 256
      %85 = vsyncadd [#allocation4], %s84
      %s86 = sshll.u32 [#allocation5], 4
      %s87 = int_to_ptr.vmem [resolvable:$true] %s86
      %92 = dma.vmem_to_hbm [thread:$0]  %s87, 256, %s2, [#allocation4], 128, 128, 8
    $region17: #{tpu_custom_call.1} parent=1 // pred_fallthru
      _
    // Predicated region
    $region18: #{tpu_custom_call.1} parent=1 // pred_check
      _
    $region19: #{tpu_custom_call.1} parent=1 // pred_check_branch
      %94 = sbr.rel (0) target = $region21
    $region20: #{tpu_custom_call.1} parent=1 // pred_region
      %95 = dma.done [#allocation4], 256
    $region21: #{tpu_custom_call.1} parent=1 // pred_fallthru
      _
    %96 = vsyncpa [#allocation3], 1
    %97 = vsyncpa [#allocation4], 1

</llo_original>
